<compile_context>
chip_gen: v5e
topology: v5e:2x2
jax: 0.10.0
libtpu: 0.0.40
codegen_flags: <defaults>
</compile_context>

<pallas_src>
import functools
import numpy as np

import jax
import jax.numpy as jnp
from jax import lax
from jax.experimental import pallas as pl
from jax.experimental.pallas import tpu as pltpu


def _round_up(x, m):
    return (x + m - 1) // m * m


# ----------------------------------------------------------------------------
# Fused kernel: y = Dropout_p(x) @ W + b     (W resident, bf16 MXU operands)
# ----------------------------------------------------------------------------

def _dropout_linear_kernel(seed_ref, x_ref, w_ref, b_ref, o_ref, *,
                           dropout_p, training, feat_dim):
    x = x_ref[...]                                    # (tm, K) f32
    tm, K = x.shape

    if training and dropout_p > 0.0:
        if dropout_p >= 1.0:
            x = jnp.zeros_like(x)
        else:
            # Counter-based hash of the ABSOLUTE element index -> identical
            # mask regardless of tiling / column-tile id, no HBM mask input,
            # and no TPU-only PRNG primitives.
            row0 = (pl.program_id(1) * tm).astype(jnp.uint32)
            rows = lax.broadcasted_iota(jnp.uint32, (tm, K), 0) + row0
            cols = lax.broadcasted_iota(jnp.uint32, (tm, K), 1)
            seed = seed_ref[0].astype(jnp.uint32)
            h = rows * jnp.uint32(feat_dim) + cols
            h = h * jnp.uint32(0x9E3779B9) + seed * jnp.uint32(0x85EBCA6B) + jnp.uint32(1)
            h = h ^ (h >> jnp.uint32(16))
            h = h * jnp.uint32(0x7FEB352D)
            h = h ^ (h >> jnp.uint32(15))
            h = h * jnp.uint32(0x846CA68B)
            h = h ^ (h >> jnp.uint32(16))
            thresh = min(int(round(dropout_p * 4294967296.0)), 2**32 - 1)
            keep = h >= jnp.uint32(thresh)
            x = jnp.where(keep, x * jnp.float32(1.0 / (1.0 - dropout_p)),
                          jnp.float32(0.0))

    w = w_ref[...]                                    # (K, tn), stays in VMEM
    if x.dtype != w.dtype:
        x = x.astype(w.dtype)                         # bf16 MXU operands

    y = jnp.dot(x, w, preferred_element_type=jnp.float32) + b_ref[...]
    o_ref[...] = y.astype(o_ref.dtype)


# ----------------------------------------------------------------------------
# Wrapper: tiling, grid, specs
# ----------------------------------------------------------------------------

def bert_contrastive_forward(feature, w, b, seed, *, dropout_p=0.0,
                             training=False, block_m=256,
                             resident_w_budget=16 * 1024 * 1024):
    """feature: [M, K] f32, w: [K, N] (pre-transposed vs torch, bf16 ok),
    b: [N] f32.  Returns f32 [M, N]."""
    M, K = feature.shape
    Kw, N = w.shape
    assert K == Kw, (K, Kw)
    w_isz = jnp.dtype(w.dtype).itemsize

    # --- row tiling: multiples of 8 (sublane), tm defaults to 256 ----------
    Mp = _round_up(M, 8)
    tm = min(block_m, Mp)
    Mp = _round_up(Mp, tm)
    n_rows = Mp // tm

    # --- column tiling: keep W resident when it fits the VMEM budget -------
    if N % 128 != 0:
        # TODO(synk): very large non-128-aligned N would need an explicit
        # K/N split; BERT hidden sizes are 128-aligned or small.
        tn = N
    elif K * N * w_isz <= resident_w_budget:
        tn = N
        if n_rows == 1 and N % 256 == 0:
            tn = N // 2          # give v7x's second TensorCore work
    else:
        tn = 128
        while N % (tn * 2) == 0 and K * (tn * 2) * w_isz <= resident_w_budget:
            tn *= 2
    n_cols = N // tn

    x = feature
    if Mp != M:
        x = jnp.pad(x, ((0, Mp - M), (0, 0)))
    b2 = b.reshape(1, N).astype(jnp.float32)
    seed_arr = jnp.asarray(seed, dtype=jnp.int32).reshape((1,))

    # Grid: column tiles OUTER, row tiles INNER -> W's block index (0, j) is
    # constant across the inner sweep (DMA'd once per column tile; exactly
    # once overall when n_cols == 1).
    grid = (n_cols, n_rows)

    kernel = functools.partial(
        _dropout_linear_kernel,
        dropout_p=float(dropout_p), training=bool(training), feat_dim=K)

    vmem_needed = (2 * tm * K * 4          # x (double-buffered, f32)
                   + 2 * K * tn * w_isz    # W
                   + 2 * tm * tn * 4       # out
                   + 2 * tn * 4)           # bias
    vmem_limit = int(min(64 * 1024 * 1024,
                         max(vmem_needed + (4 << 20), 16 * 1024 * 1024)))

    cost = pl.CostEstimate(
        flops=2 * M * K * N,
        transcendentals=0,
        bytes_accessed=M * K * 4 + K * N * w_isz + N * 4 + M * N * 4)

    out = pl.pallas_call(
        kernel,
        grid_spec=pltpu.PrefetchScalarGridSpec(
            num_scalar_prefetch=1,                 # dropout seed in SMEM
            grid=grid,
            in_specs=[
                pl.BlockSpec((tm, K), lambda j, i, seed: (i, 0)),
                pl.BlockSpec((K, tn), lambda j, i, seed: (0, j)),  # resident
                pl.BlockSpec((1, tn), lambda j, i, seed: (0, j)),
            ],
            out_specs=pl.BlockSpec((tm, tn), lambda j, i, seed: (i, j)),
        ),
        out_shape=jax.ShapeDtypeStruct((Mp, N), jnp.float32),
        compiler_params=pltpu.CompilerParams(
            dimension_semantics=("parallel", "parallel"),
            vmem_limit_bytes=vmem_limit),
        cost_estimate=cost,
    )(seed_arr, x, w, b2)

    return out[:M] if Mp != M else out


@functools.partial(jax.jit,
                   static_argnames=("dropout_p", "training", "block_m"))
def _jitted_forward(feature, w, b, seed, *, dropout_p, training, block_m):
    return bert_contrastive_forward(feature, w, b, seed,
                                    dropout_p=dropout_p, training=training,
                                    block_m=block_m)


# ----------------------------------------------------------------------------
# Module wrapper
# ----------------------------------------------------------------------------

class BertContrastivePallas:
    """Pallas port of `BertContrastive`: x = dropout(feature); x = out_proj(x)."""

    def __init__(self, config, key, weight_dtype=jnp.bfloat16):
        H = config.hidden_size
        kw, kb = jax.random.split(key)
        bound = 1.0 / np.sqrt(H)
        # PyTorch-Linear-like init; weight pre-transposed [in, out], stored
        # bf16 so the MXU consumes it natively and weight DMA bytes halve.
        self.w = jax.random.uniform(kw, (H, H), jnp.float32,
                                    -bound, bound).astype(weight_dtype)
        self.b = jax.random.uniform(kb, (H,), jnp.float32, -bound, bound)
        self.p = float(config.hidden_dropout_prob)

    def forward(self, feature, *, training=False, seed=0, block_m=256):
        # TODO(synk): torch-bit-exact dropout masks are not reproducible; the
        # kernel uses a counter-based hash with identical keep-prob/scaling.
        return _jitted_forward(feature, self.w, self.b, jnp.int32(seed),
                               dropout_p=self.p, training=training,
                               block_m=block_m)


# ----------------------------------------------------------------------------
# Demo / checks (small shapes)
# ----------------------------------------------------------------------------

if __name__ == "__main__":
    class Config:                      # small BERT-like config
        hidden_size = 32
        hidden_dropout_prob = 0.1

    class ConfigBig:
        hidden_size = 256
        hidden_dropout_prob = 0.1

    key = jax.random.PRNGKey(0)
    k_m1, k_m2, k_x1, k_x2, k_x3 = jax.random.split(key, 5)

    # --- eval path, hidden=32, batch=8 ---------------------------------
    model = BertContrastivePallas(Config(), k_m1)
    feat = jax.random.normal(k_x1, (8, Config.hidden_size), jnp.float32)
    out = model.forward(feat, training=False)
    jax.block_until_ready(out)
    w_f32 = model.w.astype(jnp.float32)
    ref = feat.astype(jnp.bfloat16).astype(jnp.float32) @ w_f32 + model.b
    np.testing.assert_allclose(np.asarray(out), np.asarray(ref),
                               rtol=1e-4, atol=1e-4)

    # --- eval path, hidden=256 (lane-aligned, resident-W path) ----------
    model_big = BertContrastivePallas(ConfigBig(), k_m2)
    feat_big = jax.random.normal(k_x2, (16, ConfigBig.hidden_size), jnp.float32)
    out_big = model_big.forward(feat_big, training=False)
    jax.block_until_ready(out_big)
    ref_big = (feat_big.astype(jnp.bfloat16).astype(jnp.float32)
               @ model_big.w.astype(jnp.float32) + model_big.b)
    np.testing.assert_allclose(np.asarray(out_big), np.asarray(ref_big),
                               rtol=1e-3, atol=1e-3)

    # --- non-aligned rows (M=5 -> padded to 8) ---------------------------
    feat_small = jax.random.normal(k_x3, (5, Config.hidden_size), jnp.float32)
    out_small = model.forward(feat_small, training=False)
    jax.block_until_ready(out_small)
    ref_small = (feat_small.astype(jnp.bfloat16).astype(jnp.float32)
                 @ w_f32 + model.b)
    np.testing.assert_allclose(np.asarray(out_small), np.asarray(ref_small),
                               rtol=1e-4, atol=1e-4)

    # --- train path: in-kernel hash dropout ------------------------------
    out_t1 = model.forward(feat, training=True, seed=123)
    out_t2 = model.forward(feat, training=True, seed=123)
    out_t3 = model.forward(feat, training=True, seed=777)
    jax.block_until_ready((out_t1, out_t2, out_t3))
    assert out_t1.shape == (8, Config.hidden_size)
    assert np.all(np.isfinite(np.asarray(out_t1)))
    np.testing.assert_array_equal(np.asarray(out_t1), np.asarray(out_t2))
    assert not np.allclose(np.asarray(out_t1), np.asarray(out_t3))

    print("KERNEL_OK")
</pallas_src>

<mosaic_0001>
module attributes {stable_mosaic.version = 11 : i64} {
  func.func @_dropout_linear_kernel(%arg0: i32, %arg1: i32, %arg2: memref<1xi32, #tpu.memory_space<smem>>, %arg3: memref<8x32xf32, #tpu.memory_space<vmem>>, %arg4: memref<32x32xbf16, #tpu.memory_space<vmem>>, %arg5: memref<1x32xf32, #tpu.memory_space<vmem>>, %arg6: memref<8x32xf32, #tpu.memory_space<vmem>>) attributes {dimension_semantics = [#tpu.dimension_semantics<parallel>, #tpu.dimension_semantics<parallel>], iteration_bounds = array<i64: 1, 1>, scalar_prefetch = 1 : i64, scratch_operands = 0 : i64, tpu.core_type = #tpu.core_type<tc>, window_params = [{transform_indices = @transform_0, window_bounds = array<i64: 8, 32>}, {transform_indices = @transform_1, window_bounds = array<i64: 32, 32>}, {transform_indices = @transform_2, window_bounds = array<i64: 1, 32>}, {transform_indices = @transform_3, window_bounds = array<i64: 8, 32>}]} {
    %c0 = arith.constant 0 : index
    %c0_0 = arith.constant 0 : index
    %0 = vector.load %arg3[%c0, %c0_0] : memref<8x32xf32, #tpu.memory_space<vmem>>, vector<8x32xf32>
    %c0_1 = arith.constant 0 : index
    %c0_2 = arith.constant 0 : index
    %1 = vector.load %arg4[%c0_1, %c0_2] : memref<32x32xbf16, #tpu.memory_space<vmem>>, vector<32x32xbf16>
    %2 = arith.truncf %0 : vector<8x32xf32> to vector<8x32xbf16>
    %cst = arith.constant dense<0.000000e+00> : vector<8x32xf32>
    %3 = tpu.matmul %2, %1, %cst {dimension_numbers = #tpu.dot_dimension_numbers<[1], [0], [0], [1], [0, 0, 1, 1], [], []>} : vector<8x32xbf16>, vector<32x32xbf16>, vector<8x32xf32> -> vector<8x32xf32>
    %c0_3 = arith.constant 0 : index
    %c0_4 = arith.constant 0 : index
    %4 = vector.load %arg5[%c0_3, %c0_4] : memref<1x32xf32, #tpu.memory_space<vmem>>, vector<1x32xf32>
    %5 = vector.broadcast %4 : vector<1x32xf32> to vector<8x32xf32>
    %6 = arith.addf %3, %5 : vector<8x32xf32>
    %c0_5 = arith.constant 0 : index
    %c0_6 = arith.constant 0 : index
    %7 = vector.load %arg6[%c0_5, %c0_6] : memref<8x32xf32, #tpu.memory_space<vmem>>, vector<8x32xf32>
    tpu.vector_store %arg6[%c0_5, %c0_6], %6 {strides = array<i32>} : memref<8x32xf32, #tpu.memory_space<vmem>>, vector<8x32xf32>,
    return
  }
  func.func @transform_0(%arg0: i32, %arg1: i32, %arg2: memref<1xi32, #tpu.memory_space<smem>>) -> (i32, i32) {
    %c0_i32 = arith.constant 0 : i32
    %c0_i32_0 = arith.constant 0 : i32
    return %arg1, %c0_i32 : i32, i32
  }
  func.func @transform_1(%arg0: i32, %arg1: i32, %arg2: memref<1xi32, #tpu.memory_space<smem>>) -> (i32, i32) {
    %c0_i32 = arith.constant 0 : i32
    %c0_i32_0 = arith.constant 0 : i32
    return %c0_i32, %arg0 : i32, i32
  }
  func.func @transform_2(%arg0: i32, %arg1: i32, %arg2: memref<1xi32, #tpu.memory_space<smem>>) -> (i32, i32) {
    %c0_i32 = arith.constant 0 : i32
    %c0_i32_0 = arith.constant 0 : i32
    return %c0_i32, %arg0 : i32, i32
  }
  func.func @transform_3(%arg0: i32, %arg1: i32, %arg2: memref<1xi32, #tpu.memory_space<smem>>) -> (i32, i32) {
    %c0_i32 = arith.constant 0 : i32
    return %arg1, %arg0 : i32, i32
  }
}

</mosaic_0001>

<llo_original>
// kernel: _jitted_forward.1
$region0: #{_jitted_forward.1}
  #allocation0 [shape = 'u32[]', space=smem, size = 0x4, offset = 0x4, fixed_abs, tag = 'smem constant byte address 0x4 - core index']
  #allocation1 [shape = 'u32[72,128]{1,0:T(1,128)}', space=vmem, size = 0x9000, scoped, tag = 'internal scratch']
  #allocation2 [shape = 's32[1]{0}', space=sflag, size = 0x4, scoped, tag = 'scoped memory for _jitted_forward.1']
  #allocation3 [shape = 's32[1]{0:T(128)S(6)}', space=smem, size = 0x200, scoped, tag = 'prefetched SMEM operand 0']
  %s0 = inlined_call_operand.<no memory space> [shape: s32[1], index: 0, kind: input, shape index: {}]
  %s1 = inlined_call_operand.hbm [shape: f32[8,32], index: 1, kind: input, shape index: {}]
  %s2 = inlined_call_operand.hbm [shape: bf16[32,32], index: 2, kind: input, shape index: {}]
  %s3 = inlined_call_operand.vmem [shape: f32[1,32], index: 3, kind: input, shape index: {}]
  %s4 = inlined_call_operand.hbm [shape: f32[8,32], index: 4, kind: output, shape index: {}]
  %s5 = sld [smem:[#allocation0]]
  $region30: #{_jitted_forward.1} parent=0
    _
  %s7 = ssub.s32 1, %s5
  %s8 = scalar_select 0, %s7, %s5
  %9 = sst [smem:[#allocation3]] %s0
  $region1: #{_jitted_forward.1} parent=0
    #allocation4 [shape = 'u8[4096]{0}', space=vmem, size = 0x1000, scoped, tag = 'input window, operand 1, single buffered']
    #allocation5 [shape = 's32[1]{0}', space=sflag, size = 0x4, scoped, tag = 'scoped memory for _jitted_forward.1']
    #allocation6 [shape = 's32[1]{0}', space=sflag, size = 0x4, scoped, tag = 'scoped memory for _jitted_forward.1']
    #allocation7 [shape = 'u8[8192]{0}', space=vmem, size = 0x2000, scoped, tag = 'input window, operand 2, single buffered']
    #allocation8 [shape = 's32[1]{0}', space=sflag, size = 0x4, scoped, tag = 'scoped memory for _jitted_forward.1']
    #allocation9 [shape = 'u8[4096]{0}', space=vmem, size = 0x1000, scoped, tag = 'output window, operand 0, single buffered']
    %10 = vsyncpa [#allocation5], 0
    %11 = vsyncpa [#allocation8], 0
    %12 = vsyncpa [#allocation6], 0
    // Predicated region
    $region2: #{_jitted_forward.1} parent=1 // pred_check
      _
    $region3: #{_jitted_forward.1} parent=1 // pred_check_branch
      %14 = sbr.rel (0) target = $region5
    $region4: #{_jitted_forward.1} parent=1 // pred_region
      %16 = vsyncadd [#allocation5], 0
      %s18 = sshll.u32 %s1, 4
      %s19 = int_to_ptr.hbm [resolvable:$true] %s18
      %s20 = sshll.u32 [#allocation4], 4
      %s21 = int_to_ptr.vmem [resolvable:$true] %s20
      %23 = dma.hbm_to_vmem [thread:$0]  %s19, 128, %s21, [#allocation5]
    $region5: #{_jitted_forward.1} parent=1 // pred_fallthru
      _
    // Predicated region
    $region6: #{_jitted_forward.1} parent=1 // pred_check
      _
    $region7: #{_jitted_forward.1} parent=1 // pred_check_branch
      %25 = sbr.rel (0) target = $region9
    $region8: #{_jitted_forward.1} parent=1 // pred_region
      %27 = vsyncadd [#allocation8], 0
      %s28 = sshll.u32 %s2, 4
      %s29 = int_to_ptr.hbm [resolvable:$true] %s28
      %s30 = sshll.u32 [#allocation7], 4
      %s31 = int_to_ptr.vmem [resolvable:$true] %s30
      %36 = dma.hbm_to_vmem [thread:$0]  %s29, 256, %s31, [#allocation8], 64, 64, 4
    $region9: #{_jitted_forward.1} parent=1 // pred_fallthru
      _
    // Predicated region
    $region10: #{_jitted_forward.1} parent=1 // pred_check
      _
    $region11: #{_jitted_forward.1} parent=1 // pred_check_branch
      %38 = sbr.rel (0) target = $region13
    $region12: #{_jitted_forward.1} parent=1 // pred_region
      _
    $region13: #{_jitted_forward.1} parent=1 // pred_fallthru
      _
    // Predicated region
    $region14: #{_jitted_forward.1} parent=1 // pred_check
      _
    $region15: #{_jitted_forward.1} parent=1 // pred_check_branch
      %40 = sbr.rel (0) target = $region17
    $region16: #{_jitted_forward.1} parent=1 // pred_region
      %42 = dma.done [#allocation5], 128
    $region17: #{_jitted_forward.1} parent=1 // pred_fallthru
      _
    // Predicated region
    $region18: #{_jitted_forward.1} parent=1 // pred_check
      _
    $region19: #{_jitted_forward.1} parent=1 // pred_check_branch
      %44 = sbr.rel (0) target = $region21
    $region20: #{_jitted_forward.1} parent=1 // pred_region
      %46 = dma.done [#allocation8], 256
    $region21: #{_jitted_forward.1} parent=1 // pred_fallthru
      _
    %v48 = vld [vmem:[#allocation4] sm:$0xff]
    %v49 = vld [vmem:[#allocation7] sm:$0xf]
    %v50 = vld [vmem:[#allocation7 + $0x4] sm:$0xf]
    %v51 = vld [vmem:[#allocation7 + $0x8] sm:$0xf]
    %v52 = vld [vmem:[#allocation7 + $0xc] sm:$0xf]
    %v53 = vpack.c.bf16 %v48, %v48
    %v54 = vld [vmem:[%s3] sm:$0x1]
    %v56 = vperm.slane %v54, 0
    %v62 = vunpack.c.l.b16 %v49
    %v63 = vunpack.c.l.b16 %v50
    %v64 = vunpack.c.l.b16 %v51
    %v65 = vunpack.c.l.b16 %v52
    %v66 = vpack.c.b16 %v63, %v62
    %v67 = vpack.c.b16 %v65, %v64
    %vm70 = vcmask 261120
    %v72 = vsel %vm70, %v53, 0
    %74 = vmatpush.bf16.msra.mxu0 0
    %75 = vmatpush.bf16.msra.mxu0 0
    %76 = vmatpush.bf16.msra.mxu0 0
    %77 = vmatpush.bf16.msra.mxu0 0
    %78 = vmatpush.bf16.msra.mxu0 0
    %79 = vmatpush.bf16.msra.mxu0 0
    %80 = vmatpush.bf16.msra.mxu0 %v67
    %81 = vmatpush.bf16.msra.mxu0 %v66
    %82 = vmatmul.bf16.gmra.mxu0 %v72
    %v83 = vpop.f32.mrf.mxu0
    %v84 = vadd.f32 %v56, %v83
    %v85 = vpop.f32.mrf.mxu0
    %86 = vdwg.mxu0
    %87 = vst.msk [vmem:[#allocation9] sm:$0xff] %vm70, %v84
    // Predicated region
    $region22: #{_jitted_forward.1} parent=1 // pred_check
      _
    $region23: #{_jitted_forward.1} parent=1 // pred_check_branch
      %89 = sbr.rel (0) target = $region25
    $region24: #{_jitted_forward.1} parent=1 // pred_region
      %91 = vsyncadd [#allocation6], 0
      %s93 = sshll.u32 [#allocation9], 4
      %s94 = int_to_ptr.vmem [resolvable:$true] %s93
      %s95 = sshll.u32 %s4, 4
      %s96 = int_to_ptr.hbm [resolvable:$true] %s95
      %98 = dma.vmem_to_hbm [thread:$0]  %s94, 128, %s96, [#allocation6]
    $region25: #{_jitted_forward.1} parent=1 // pred_fallthru
      _
    // Predicated region
    $region26: #{_jitted_forward.1} parent=1 // pred_check
      _
    $region27: #{_jitted_forward.1} parent=1 // pred_check_branch
      %100 = sbr.rel (0) target = $region29
    $region28: #{_jitted_forward.1} parent=1 // pred_region
      %102 = dma.done [#allocation6], 128
    $region29: #{_jitted_forward.1} parent=1 // pred_fallthru
      _
    %103 = vsyncpa [#allocation5], 1
    %104 = vsyncpa [#allocation8], 1
    %105 = vsyncpa [#allocation6], 1

</llo_original>
